<compile_context>
chip_gen: v7x
topology: tpu7x:2x2x1
jax: 0.10.0
libtpu: 0.0.40
codegen_flags: <defaults>
</compile_context>

<pallas_src>
import math
from functools import partial

import jax
import jax.numpy as jnp
from jax.experimental import pallas as pl
from jax.experimental.pallas import tpu as pltpu


def _gelu_exact(x):
    # matches torch.nn.GELU(approximate='none')
    return 0.5 * x * (1.0 + jax.lax.erf(x * (1.0 / math.sqrt(2.0))))


def fcu_down_kernel(x_ref, w_ref, b_ref, g_ref, beta_ref, o_ref, *, dw, wp, cout):
    """One row-tile of FCUDown.

    x_ref:    (gpt, dw*Wp, dw*Cin)  raw NHWC rows; row index = (dr, wp), K = (dc, c)
    w_ref:    (dw*Cin, Coutp)       pool-fused 1x1-conv weight (1/dw^2 folded in, zero-padded)
    b_ref:    (1, Coutp)            conv bias   (f32, zero-padded)
    g_ref:    (1, Coutp)            LN gamma    (f32, zero-padded)
    beta_ref: (1, Coutp)            LN beta     (f32, zero-padded)
    o_ref:    (gpt, Wp, Coutp)      GELU(LN(avgpool(conv1x1(x)))) tokens for this tile
    """
    gpt = x_ref.shape[0]
    coutp = o_ref.shape[2]

    x = x_ref[...]                                    # keep native dtype (review: no f32 upcast)

    # Row half of the dw x dw average pool: sum the dw image rows of each window.
    acc = x[:, 0:wp, :]
    for dr in range(1, dw):                            # dw is small & static -> unrolled
        acc = acc + x[:, dr * wp:(dr + 1) * wp, :]
    pooled = acc.reshape(gpt * wp, x.shape[2])         # (rows, dw*Cin)

    # Column half of the pool + 1x1 conv: a single MXU matmul (scale folded into w).
    y = jnp.dot(pooled, w_ref[...], preferred_element_type=jnp.float32)
    y = y + b_ref[...]                                 # f32 from here on

    # LayerNorm(eps=1e-6) over the real Cout lanes, one pass (sum / sum-of-squares).
    # Padded lanes are exactly zero (zero weight cols + zero bias), so sums are exact.
    inv_c = 1.0 / cout
    mu = jnp.sum(y, axis=-1, keepdims=True) * inv_c
    var = jnp.sum(y * y, axis=-1, keepdims=True) * inv_c - mu * mu
    yn = (y - mu) * jax.lax.rsqrt(var + 1e-6)
    yn = yn * g_ref[...] + beta_ref[...]

    out = _gelu_exact(yn)                              # exact (erf) GELU
    o_ref[...] = out.reshape(gpt, wp, coutp).astype(o_ref.dtype)


def _pick_groups_per_tile(num_groups, group_bytes, min_steps=2, budget_bytes=4 << 20):
    """Largest divisor of num_groups that fits the VMEM budget and keeps >=2 grid steps."""
    max_by_budget = max(1, budget_bytes // max(group_bytes, 1))
    best = 1
    for g in range(1, num_groups + 1):
        if num_groups % g != 0 or g > max_by_budget:
            continue
        if num_groups >= min_steps and (num_groups // g) < min_steps:
            continue
        best = g
    return best


def fcu_down(x, x_t, conv_w, conv_b, ln_g, ln_b, dw_stride, channels_last=False):
    """FCUDown forward.

    x:   (B, Cin, H, W) if channels_last=False (PyTorch NCHW), else (B, H, W, Cin).
         With NHWC input the wrapper is copy-free: the matmul LHS is a pure reshape view.
    x_t: (B, 1 + Lt, Cout) transformer tokens (only the class token is used).
    Returns (B, 1 + L, Cout) with L = (H // dw_stride) * (W // dw_stride).
    """
    if channels_last:
        B, H, W, Cin = x.shape
        xh = x
    else:
        B, Cin, H, W = x.shape
        # Single NCHW->NHWC transpose (far cheaper than the old 6-D patch transpose,
        # and skipped entirely when the caller already has NHWC activations).
        xh = jnp.transpose(x, (0, 2, 3, 1))

    dw = dw_stride
    assert H % dw == 0 and W % dw == 0, (H, W, dw)
    Cout = conv_w.shape[0]
    Hp, Wp = H // dw, W // dw
    L = Hp * Wp
    G = B * Hp                                   # row groups; each yields Wp output tokens
    dwcin = dw * Cin
    Coutp = ((Cout + 127) // 128) * 128          # lane-dense (multiple of 128) output width
    pad_c = Coutp - Cout

    # Free reshape of NHWC: rows ordered (b, hp, dr, wp), K ordered (dc, c).
    lhs = xh.reshape(G, dw * Wp, dwcin)

    # Pool-fused, zero-padded parameters.
    wt = conv_w.reshape(Cout, Cin).T.astype(x.dtype)            # (Cin, Cout)
    wk = jnp.tile(wt, (dw, 1)) * (1.0 / (dw * dw))              # (dw*Cin, Cout), K = dc*Cin+c
    wk = jnp.pad(wk, ((0, 0), (0, pad_c)))
    bp = jnp.pad(conv_b.astype(jnp.float32).reshape(1, Cout), ((0, 0), (0, pad_c)))
    gp = jnp.pad(ln_g.astype(jnp.float32).reshape(1, Cout), ((0, 0), (0, pad_c)))
    btp = jnp.pad(ln_b.astype(jnp.float32).reshape(1, Cout), ((0, 0), (0, pad_c)))

    group_bytes = dw * Wp * dwcin * jnp.dtype(x.dtype).itemsize
    gpt = _pick_groups_per_tile(G, group_bytes)
    grid = (G // gpt,)

    out = pl.pallas_call(
        partial(fcu_down_kernel, dw=dw, wp=Wp, cout=Cout),
        out_shape=jax.ShapeDtypeStruct((G, Wp, Coutp), x.dtype),
        grid_spec=pltpu.PrefetchScalarGridSpec(
            num_scalar_prefetch=0,
            grid=grid,
            in_specs=[
                pl.BlockSpec((gpt, dw * Wp, dwcin), lambda t: (t, 0, 0)),
                pl.BlockSpec((dwcin, Coutp), lambda t: (0, 0)),   # weight stays resident
                pl.BlockSpec((1, Coutp), lambda t: (0, 0)),
                pl.BlockSpec((1, Coutp), lambda t: (0, 0)),
                pl.BlockSpec((1, Coutp), lambda t: (0, 0)),
            ],
            out_specs=pl.BlockSpec((gpt, Wp, Coutp), lambda t: (t, 0, 0)),
        ),
        compiler_params=pltpu.CompilerParams(
            dimension_semantics=("parallel",),
        ),
    )(lhs, wk, bp, gp, btp)

    y = out.reshape(B, L, Coutp)
    if pad_c:
        y = y[:, :, :Cout]
    # TODO(synk): write the class token + body straight into a (B, 1+L, Cout) buffer
    # inside the kernel to drop this small output-sized concat copy.
    return jnp.concatenate([x_t[:, :1, :].astype(y.dtype), y], axis=1)


def _reference(x, x_t, conv_w, conv_b, ln_g, ln_b, dw_stride):
    # Plain-JAX reference mirroring the PyTorch forward (conv -> pool -> LN -> GELU -> cat).
    B, Cin, H, W = x.shape
    Cout = conv_w.shape[0]
    y = jnp.einsum("bchw,oc->bohw", x, conv_w.reshape(Cout, Cin)) + conv_b[None, :, None, None]
    Hp, Wp = H // dw_stride, W // dw_stride
    y = y.reshape(B, Cout, Hp, dw_stride, Wp, dw_stride).mean(axis=(3, 5))
    y = y.reshape(B, Cout, Hp * Wp).transpose(0, 2, 1)
    mu = y.mean(-1, keepdims=True)
    var = ((y - mu) ** 2).mean(-1, keepdims=True)
    y = (y - mu) / jnp.sqrt(var + 1e-6) * ln_g + ln_b
    y = _gelu_exact(y)
    return jnp.concatenate([x_t[:, :1, :], y], axis=1)


if __name__ == "__main__":
    B, Cin, H, W = 2, 16, 16, 16
    Cout = 32
    dw_stride = 4
    L = (H // dw_stride) * (W // dw_stride)

    key = jax.random.PRNGKey(0)
    k1, k2, k3, k4, k5, k6 = jax.random.split(key, 6)
    x = jax.random.normal(k1, (B, Cin, H, W), dtype=jnp.float32)       # NCHW, like the torch module
    x_t = jax.random.normal(k2, (B, 1 + L, Cout), dtype=jnp.float32)
    conv_w = (jax.random.normal(k3, (Cout, Cin, 1, 1), dtype=jnp.float32)
              * (1.0 / math.sqrt(Cin)))
    conv_b = jax.random.normal(k4, (Cout,), dtype=jnp.float32) * 0.02
    ln_g = 1.0 + 0.05 * jax.random.normal(k5, (Cout,), dtype=jnp.float32)
    ln_b = 0.05 * jax.random.normal(k6, (Cout,), dtype=jnp.float32)

    fcu = jax.jit(partial(fcu_down, dw_stride=dw_stride))
    out = jax.block_until_ready(fcu(x, x_t, conv_w, conv_b, ln_g, ln_b))

    ref = _reference(x, x_t, conv_w, conv_b, ln_g, ln_b, dw_stride)
    assert out.shape == (B, 1 + L, Cout), out.shape
    assert jnp.allclose(out, ref, atol=1e-4, rtol=1e-4), float(jnp.max(jnp.abs(out - ref)))

    # Copy-free NHWC entry point (preferred layout): identical numerics.
    out_nhwc = fcu_down(jnp.transpose(x, (0, 2, 3, 1)), x_t, conv_w, conv_b, ln_g, ln_b,
                        dw_stride, channels_last=True)
    out_nhwc = jax.block_until_ready(out_nhwc)
    assert jnp.allclose(out_nhwc, ref, atol=1e-4, rtol=1e-4), \
        float(jnp.max(jnp.abs(out_nhwc - ref)))

    print("KERNEL_OK")
</pallas_src>

<mosaic_0001>
module attributes {stable_mosaic.version = 11 : i64} {
  func.func @fcu_down_kernel(%arg0: i32, %arg1: memref<4x16x64xf32, #tpu.memory_space<vmem>>, %arg2: memref<64x128xf32, #tpu.memory_space<vmem>>, %arg3: memref<1x128xf32, #tpu.memory_space<vmem>>, %arg4: memref<1x128xf32, #tpu.memory_space<vmem>>, %arg5: memref<1x128xf32, #tpu.memory_space<vmem>>, %arg6: memref<4x4x128xf32, #tpu.memory_space<vmem>>) attributes {dimension_semantics = [#tpu.dimension_semantics<parallel>], iteration_bounds = array<i64: 2>, scalar_prefetch = 0 : i64, scratch_operands = 0 : i64, tpu.core_type = #tpu.core_type<tc>, window_params = [{transform_indices = @transform_0, window_bounds = array<i64: 4, 16, 64>}, {pipeline_mode = #tpu.pipeline_mode<synchronous>, transform_indices = @transform_1, window_bounds = array<i64: 64, 128>}, {pipeline_mode = #tpu.pipeline_mode<synchronous>, transform_indices = @transform_2, window_bounds = array<i64: 1, 128>}, {pipeline_mode = #tpu.pipeline_mode<synchronous>, transform_indices = @transform_3, window_bounds = array<i64: 1, 128>}, {pipeline_mode = #tpu.pipeline_mode<synchronous>, transform_indices = @transform_4, window_bounds = array<i64: 1, 128>}, {transform_indices = @transform_5, window_bounds = array<i64: 4, 4, 128>}]} {
    %c0 = arith.constant 0 : index
    %c0_0 = arith.constant 0 : index
    %c0_1 = arith.constant 0 : index
    %0 = vector.load %arg1[%c0, %c0_0, %c0_1] : memref<4x16x64xf32, #tpu.memory_space<vmem>>, vector<4x16x64xf32>
    %1 = vector.extract_strided_slice %0 {offsets = [0, 0, 0], sizes = [4, 4, 64], strides = [1, 1, 1]} : vector<4x16x64xf32> to vector<4x4x64xf32>
    %2 = vector.extract_strided_slice %0 {offsets = [0, 4, 0], sizes = [4, 4, 64], strides = [1, 1, 1]} : vector<4x16x64xf32> to vector<4x4x64xf32>
    %3 = arith.addf %1, %2 : vector<4x4x64xf32>
    %4 = vector.extract_strided_slice %0 {offsets = [0, 8, 0], sizes = [4, 4, 64], strides = [1, 1, 1]} : vector<4x16x64xf32> to vector<4x4x64xf32>
    %5 = arith.addf %3, %4 : vector<4x4x64xf32>
    %6 = vector.extract_strided_slice %0 {offsets = [0, 12, 0], sizes = [4, 4, 64], strides = [1, 1, 1]} : vector<4x16x64xf32> to vector<4x4x64xf32>
    %7 = arith.addf %5, %6 : vector<4x4x64xf32>
    %8 = vector.shape_cast %7 : vector<4x4x64xf32> to vector<16x64xf32>
    %c0_2 = arith.constant 0 : index
    %c0_3 = arith.constant 0 : index
    %9 = vector.load %arg2[%c0_2, %c0_3] : memref<64x128xf32, #tpu.memory_space<vmem>>, vector<64x128xf32>
    %cst = arith.constant dense<0.000000e+00> : vector<16x128xf32>
    %10 = tpu.matmul %8, %9, %cst {dimension_numbers = #tpu.dot_dimension_numbers<[1], [0], [0], [1], [0, 0, 1, 1], [], []>} : vector<16x64xf32>, vector<64x128xf32>, vector<16x128xf32> -> vector<16x128xf32>
    %c0_4 = arith.constant 0 : index
    %c0_5 = arith.constant 0 : index
    %11 = vector.load %arg3[%c0_4, %c0_5] : memref<1x128xf32, #tpu.memory_space<vmem>>, vector<1x128xf32>
    %12 = vector.broadcast %11 : vector<1x128xf32> to vector<16x128xf32>
    %13 = arith.addf %10, %12 : vector<16x128xf32>
    %cst_6 = arith.constant dense<0.000000e+00> : vector<16xf32>
    %14 = vector.multi_reduction <add>, %13, %cst_6 [1] : vector<16x128xf32> to vector<16xf32>
    %15 = vector.shape_cast %14 : vector<16xf32> to vector<16x1xf32>
    %cst_7 = arith.constant 3.125000e-02 : f32
    %16 = vector.broadcast %cst_7 : f32 to vector<16x1xf32>
    %17 = arith.mulf %15, %16 : vector<16x1xf32>
    %18 = arith.mulf %13, %13 : vector<16x128xf32>
    %cst_8 = arith.constant dense<0.000000e+00> : vector<16xf32>
    %19 = vector.multi_reduction <add>, %18, %cst_8 [1] : vector<16x128xf32> to vector<16xf32>
    %20 = vector.shape_cast %19 : vector<16xf32> to vector<16x1xf32>
    %cst_9 = arith.constant 3.125000e-02 : f32
    %21 = vector.broadcast %cst_9 : f32 to vector<16x1xf32>
    %22 = arith.mulf %20, %21 : vector<16x1xf32>
    %23 = arith.mulf %17, %17 : vector<16x1xf32>
    %24 = arith.subf %22, %23 : vector<16x1xf32>
    %25 = vector.broadcast %17 : vector<16x1xf32> to vector<16x128xf32>
    %26 = arith.subf %13, %25 : vector<16x128xf32>
    %cst_10 = arith.constant 9.99999997E-7 : f32
    %27 = vector.broadcast %cst_10 : f32 to vector<16x1xf32>
    %28 = arith.addf %24, %27 : vector<16x1xf32>
    %29 = math.rsqrt %28 : vector<16x1xf32>
    %30 = vector.broadcast %29 : vector<16x1xf32> to vector<16x128xf32>
    %31 = arith.mulf %26, %30 : vector<16x128xf32>
    %c0_11 = arith.constant 0 : index
    %c0_12 = arith.constant 0 : index
    %32 = vector.load %arg4[%c0_11, %c0_12] : memref<1x128xf32, #tpu.memory_space<vmem>>, vector<1x128xf32>
    %33 = vector.broadcast %32 : vector<1x128xf32> to vector<16x128xf32>
    %34 = arith.mulf %31, %33 : vector<16x128xf32>
    %c0_13 = arith.constant 0 : index
    %c0_14 = arith.constant 0 : index
    %35 = vector.load %arg5[%c0_13, %c0_14] : memref<1x128xf32, #tpu.memory_space<vmem>>, vector<1x128xf32>
    %36 = vector.broadcast %35 : vector<1x128xf32> to vector<16x128xf32>
    %37 = arith.addf %34, %36 : vector<16x128xf32>
    %cst_15 = arith.constant 5.000000e-01 : f32
    %38 = vector.broadcast %cst_15 : f32 to vector<16x128xf32>
    %39 = arith.mulf %38, %37 : vector<16x128xf32>
    %cst_16 = arith.constant 0.707106769 : f32
    %40 = vector.broadcast %cst_16 : f32 to vector<16x128xf32>
    %41 = arith.mulf %37, %40 : vector<16x128xf32>
    %42 = math.erf %41 : vector<16x128xf32>
    %cst_17 = arith.constant 1.000000e+00 : f32
    %43 = vector.broadcast %cst_17 : f32 to vector<16x128xf32>
    %44 = arith.addf %43, %42 : vector<16x128xf32>
    %45 = arith.mulf %39, %44 : vector<16x128xf32>
    %46 = vector.shape_cast %45 : vector<16x128xf32> to vector<4x4x128xf32>
    %c0_18 = arith.constant 0 : index
    %c0_19 = arith.constant 0 : index
    %c0_20 = arith.constant 0 : index
    %47 = vector.load %arg6[%c0_18, %c0_19, %c0_20] : memref<4x4x128xf32, #tpu.memory_space<vmem>>, vector<4x4x128xf32>
    tpu.vector_store %arg6[%c0_18, %c0_19, %c0_20], %46 {strides = array<i32>} : memref<4x4x128xf32, #tpu.memory_space<vmem>>, vector<4x4x128xf32>,
    return
  }
  func.func @transform_0(%arg0: i32) -> (i32, i32, i32) {
    %c0_i32 = arith.constant 0 : i32
    %c0_i32_0 = arith.constant 0 : i32
    %c0_i32_1 = arith.constant 0 : i32
    return %arg0, %c0_i32, %c0_i32_0 : i32, i32, i32
  }
  func.func @transform_1(%arg0: i32) -> (i32, i32) {
    %c0_i32 = arith.constant 0 : i32
    %c0_i32_0 = arith.constant 0 : i32
    %c0_i32_1 = arith.constant 0 : i32
    return %c0_i32, %c0_i32_0 : i32, i32
  }
  func.func @transform_2(%arg0: i32) -> (i32, i32) {
    %c0_i32 = arith.constant 0 : i32
    %c0_i32_0 = arith.constant 0 : i32
    %c0_i32_1 = arith.constant 0 : i32
    return %c0_i32, %c0_i32_0 : i32, i32
  }
  func.func @transform_3(%arg0: i32) -> (i32, i32) {
    %c0_i32 = arith.constant 0 : i32
    %c0_i32_0 = arith.constant 0 : i32
    %c0_i32_1 = arith.constant 0 : i32
    return %c0_i32, %c0_i32_0 : i32, i32
  }
  func.func @transform_4(%arg0: i32) -> (i32, i32) {
    %c0_i32 = arith.constant 0 : i32
    %c0_i32_0 = arith.constant 0 : i32
    %c0_i32_1 = arith.constant 0 : i32
    return %c0_i32, %c0_i32_0 : i32, i32
  }
  func.func @transform_5(%arg0: i32) -> (i32, i32, i32) {
    %c0_i32 = arith.constant 0 : i32
    %c0_i32_0 = arith.constant 0 : i32
    %c0_i32_1 = arith.constant 0 : i32
    return %arg0, %c0_i32, %c0_i32_0 : i32, i32, i32
  }
}

</mosaic_0001>

<llo_original>
// kernel: fcu_down.1
$region0: #{fcu_down.1}
  #allocation0 [shape = 'u32[]', space=smem, size = 0x4, offset = 0x4, fixed_abs, tag = 'smem constant byte address 0x4 - core index']
  #allocation1 [shape = 'u32[144,128]{1,0:T(1,128)}', space=vmem, size = 0x12000, scoped, tag = 'internal scratch']
  %s0 = inlined_call_operand.vmem [shape: f32[8,16,64], index: 0, kind: input, shape index: {}]
  %s1 = inlined_call_operand.vmem [shape: f32[64,128], index: 1, kind: input, shape index: {}]
  %s2 = inlined_call_operand.vmem [shape: f32[1,128], index: 2, kind: input, shape index: {}]
  %s3 = inlined_call_operand.vmem [shape: f32[1,128], index: 3, kind: input, shape index: {}]
  %s4 = inlined_call_operand.vmem [shape: f32[1,128], index: 4, kind: input, shape index: {}]
  %s5 = inlined_call_operand.vmem [shape: f32[8,4,128], index: 5, kind: output, shape index: {}]
  %s6 = sld [smem:[#allocation0]]
  $region53: #{fcu_down.1} parent=0
    _
  %s8 = ssub.s32 1, %s6
  %s9 = scalar_select 0, %s8, %s6
  loop: start=0, step=1, limit=4
  $region2: #{fcu_down.1} parent=0 // loop_pre_header
    _
  $region3: #{fcu_down.1} parent=0 // loop_header
    %s11 = sphi 0, %s15
    %p12 = scmp.ge.s32.totalorder %s11, 4
    %s21 = sphi 0, %s23
    %s24 = sphi 0, %s21
    %s25 = sphi 0, %s24
    %s41 = sphi 0, %s25
    %s45 = sphi 0, %s45
    %s47 = sphi 0, %s45
    %s48 = sphi 0, %s47
    %s62 = sphi 0, %s48
    %s66 = sphi 0, %s66
    %s68 = sphi 0, %s66
    %s69 = sphi 0, %s68
    %s83 = sphi 0, %s69
    %s87 = sphi 0, %s87
    %s89 = sphi 0, %s87
    %s90 = sphi 0, %s89
    %s104 = sphi 0, %s90
    %s108 = sphi 0, %s108
    %s110 = sphi 0, %s108
    %s111 = sphi 0, %s110
    %s125 = sphi 0, %s111
    %s131 = sphi 0, %s133
    %s134 = sphi 0, %s131
    %s135 = sphi 0, %s134
    %s151 = sphi 0, %s135
  $region4: #{fcu_down.1} parent=0 // loop_header_branch
    %14 = sbr.rel (%p12) target = $region8
  $region5: #{fcu_down.1} parent=0 // loop_body
    %s16 = ssub.s32 %s11, 1
    %s17 = ssub.s32 %s11, 2
    %s18 = sadd.s32 %s11, 1
    %s19 = ssub.s32 %s11, %s18
    %p20 = scmp.eq.s32.totalorder %s19, 0
    %s22 = sadd.s32 %s21, 1
    %s23 = scalar_select %p20, %s21, %s22
    %p26 = pneg %p20
    %p27 = scmp.eq.s32.totalorder %s11, 1
    %p28 = por %p26, %p27
    %p29 = scmp.ne.s32.totalorder %s21, %s24
    %p30 = scmp.eq.s32.totalorder %s11, 0
    %p31 = por %p29, %p30
    %p32 = scmp.ne.s32.totalorder %s21, %s24
    %p33 = scmp.eq.s32.totalorder %s16, 1
    %p34 = por %p32, %p33
    %p35 = scmp.ne.s32.totalorder %s24, %s25
    %p36 = scmp.eq.s32.totalorder %s16, 0
    %p37 = por %p35, %p36
    %p38 = scmp.ne.s32.totalorder %s24, %s25
    %p39 = scmp.eq.s32.totalorder %s17, 1
    %p40 = por %p38, %p39
    %p42 = scmp.ne.s32.totalorder %s25, %s41
    %p43 = scmp.eq.s32.totalorder %s17, 0
    %p44 = por %p42, %p43
    %s46 = sadd.s32 %s45, 1
    %p49 = scmp.eq.s32.totalorder %s11, 1
    %p50 = scmp.ne.s32.totalorder %s45, %s47
    %p51 = scmp.eq.s32.totalorder %s11, 0
    %p52 = por %p50, %p51
    %p53 = scmp.ne.s32.totalorder %s45, %s47
    %p54 = scmp.eq.s32.totalorder %s16, 1
    %p55 = por %p53, %p54
    %p56 = scmp.ne.s32.totalorder %s47, %s48
    %p57 = scmp.eq.s32.totalorder %s16, 0
    %p58 = por %p56, %p57
    %p59 = scmp.ne.s32.totalorder %s47, %s48
    %p60 = scmp.eq.s32.totalorder %s17, 1
    %p61 = por %p59, %p60
    %p63 = scmp.ne.s32.totalorder %s48, %s62
    %p64 = scmp.eq.s32.totalorder %s17, 0
    %p65 = por %p63, %p64
    %s67 = sadd.s32 %s66, 1
    %p70 = scmp.eq.s32.totalorder %s11, 1
    %p71 = scmp.ne.s32.totalorder %s66, %s68
    %p72 = scmp.eq.s32.totalorder %s11, 0
    %p73 = por %p71, %p72
    %p74 = scmp.ne.s32.totalorder %s66, %s68
    %p75 = scmp.eq.s32.totalorder %s16, 1
    %p76 = por %p74, %p75
    %p77 = scmp.ne.s32.totalorder %s68, %s69
    %p78 = scmp.eq.s32.totalorder %s16, 0
    %p79 = por %p77, %p78
    %p80 = scmp.ne.s32.totalorder %s68, %s69
    %p81 = scmp.eq.s32.totalorder %s17, 1
    %p82 = por %p80, %p81
    %p84 = scmp.ne.s32.totalorder %s69, %s83
    %p85 = scmp.eq.s32.totalorder %s17, 0
    %p86 = por %p84, %p85
    %s88 = sadd.s32 %s87, 1
    %p91 = scmp.eq.s32.totalorder %s11, 1
    %p92 = scmp.ne.s32.totalorder %s87, %s89
    %p93 = scmp.eq.s32.totalorder %s11, 0
    %p94 = por %p92, %p93
    %p95 = scmp.ne.s32.totalorder %s87, %s89
    %p96 = scmp.eq.s32.totalorder %s16, 1
    %p97 = por %p95, %p96
    %p98 = scmp.ne.s32.totalorder %s89, %s90
    %p99 = scmp.eq.s32.totalorder %s16, 0
    %p100 = por %p98, %p99
    %p101 = scmp.ne.s32.totalorder %s89, %s90
    %p102 = scmp.eq.s32.totalorder %s17, 1
    %p103 = por %p101, %p102
    %p105 = scmp.ne.s32.totalorder %s90, %s104
    %p106 = scmp.eq.s32.totalorder %s17, 0
    %p107 = por %p105, %p106
    %s109 = sadd.s32 %s108, 1
    %p112 = scmp.eq.s32.totalorder %s11, 1
    %p113 = scmp.ne.s32.totalorder %s108, %s110
    %p114 = scmp.eq.s32.totalorder %s11, 0
    %p115 = por %p113, %p114
    %p116 = scmp.ne.s32.totalorder %s108, %s110
    %p117 = scmp.eq.s32.totalorder %s16, 1
    %p118 = por %p116, %p117
    %p119 = scmp.ne.s32.totalorder %s110, %s111
    %p120 = scmp.eq.s32.totalorder %s16, 0
    %p121 = por %p119, %p120
    %p122 = scmp.ne.s32.totalorder %s110, %s111
    %p123 = scmp.eq.s32.totalorder %s17, 1
    %p124 = por %p122, %p123
    %p126 = scmp.ne.s32.totalorder %s111, %s125
    %p127 = scmp.eq.s32.totalorder %s17, 0
    %p128 = por %p126, %p127
    %s129 = ssub.s32 %s11, %s18
    %p130 = scmp.eq.s32.totalorder %s129, 0
    %s132 = sadd.s32 %s131, 1
    %s133 = scalar_select %p130, %s131, %s132
    %p136 = pneg %p130
    %p137 = scmp.eq.s32.totalorder %s11, 1
    %p138 = por %p136, %p137
    %p139 = scmp.ne.s32.totalorder %s131, %s134
    %p140 = scmp.eq.s32.totalorder %s11, 0
    %p141 = por %p139, %p140
    %p142 = scmp.ne.s32.totalorder %s131, %s134
    %p143 = scmp.eq.s32.totalorder %s16, 1
    %p144 = por %p142, %p143
    %p145 = scmp.ne.s32.totalorder %s134, %s135
    %p146 = scmp.eq.s32.totalorder %s16, 0
    %p147 = por %p145, %p146
    %p148 = scmp.ne.s32.totalorder %s134, %s135
    %p149 = scmp.eq.s32.totalorder %s17, 1
    %p150 = por %p148, %p149
    %p152 = scmp.ne.s32.totalorder %s135, %s151
    %p153 = scmp.eq.s32.totalorder %s17, 0
    %p154 = por %p152, %p153
    %p155 = scmp.le.s32.totalorder 1, %s11
    %p156 = scmp.lt.s32.totalorder %s11, 3
    %p157 = pnand %p155, %p156
    %p158 = pneg %p157
    // Predicated region
    $region9: #{fcu_down.1} parent=5 // pred_check
      _
    $region10: #{fcu_down.1} parent=5 // pred_check_branch
      %160 = sbr.rel (%p157) target = $region12
    $region11: #{fcu_down.1} parent=5 // pred_region
      %s161 = ssub.s32 %s11, 1
      // Predicated region
      $region13: #{fcu_down.1} parent=11 // pred_check
        %p162 = pneg %p58
      $region14: #{fcu_down.1} parent=11 // pred_check_branch
        %164 = sbr.rel (%p162) target = $region16
      $region15: #{fcu_down.1} parent=11 // pred_region
        _
      $region16: #{fcu_down.1} parent=11 // pred_fallthru
        _
      // Predicated region
      $region17: #{fcu_down.1} parent=11 // pred_check
        %p165 = pneg %p79
      $region18: #{fcu_down.1} parent=11 // pred_check_branch
        %167 = sbr.rel (%p165) target = $region20
      $region19: #{fcu_down.1} parent=11 // pred_region
        _
      $region20: #{fcu_down.1} parent=11 // pred_fallthru
        _
      // Predicated region
      $region21: #{fcu_down.1} parent=11 // pred_check
        %p168 = pneg %p100
      $region22: #{fcu_down.1} parent=11 // pred_check_branch
        %170 = sbr.rel (%p168) target = $region24
      $region23: #{fcu_down.1} parent=11 // pred_region
        _
      $region24: #{fcu_down.1} parent=11 // pred_fallthru
        _
      // Predicated region
      $region25: #{fcu_down.1} parent=11 // pred_check
        %p171 = pneg %p121
      $region26: #{fcu_down.1} parent=11 // pred_check_branch
        %173 = sbr.rel (%p171) target = $region28
      $region27: #{fcu_down.1} parent=11 // pred_region
        _
      $region28: #{fcu_down.1} parent=11 // pred_fallthru
        _
    $region12: #{fcu_down.1} parent=5 // pred_fallthru
      _
    %p174 = scmp.lt.s32.totalorder %s11, 2
    // Predicated region
    $region29: #{fcu_down.1} parent=5 // pred_check
      %p175 = pneg %p174
    $region30: #{fcu_down.1} parent=5 // pred_check_branch
      %177 = sbr.rel (%p175) target = $region32
    $region31: #{fcu_down.1} parent=5 // pred_region
      // Predicated region
      $region33: #{fcu_down.1} parent=31 // pred_check
        %p178 = pneg %p31
      $region34: #{fcu_down.1} parent=31 // pred_check_branch
        %180 = sbr.rel (%p178) target = $region36
      $region35: #{fcu_down.1} parent=31 // pred_region
        %s181 = smul.u32 4, %s11
        %p182 = scmp.lt.s32.totalorder %s181, 7
        %s183 = scalar_select %p182, %s181, 7
        %s184 = smul.addr %s183, 2
        %s185 = smul.addr %s184, 8
        %s186 = scalar_lea.vmem %s0, %s185
        %s187 = smul.u32 4, %s11
      $region36: #{fcu_down.1} parent=31 // pred_fallthru
        _
    $region32: #{fcu_down.1} parent=5 // pred_fallthru
      _
    %p188 = scmp.le.s32.totalorder 1, %s11
    %p189 = scmp.lt.s32.totalorder %s11, 3
    %p190 = pnand %p188, %p189
    %p191 = pneg %p190
    // Predicated region
    $region37: #{fcu_down.1} parent=5 // pred_check
      _
    $region38: #{fcu_down.1} parent=5 // pred_check_branch
      %193 = sbr.rel (%p190) target = $region40
    $region39: #{fcu_down.1} parent=5 // pred_region
      %s194 = ssub.s32 %s11, 1
      %s195 = smul.u32 4, %s16
      %p196 = scmp.lt.s32.totalorder %s195, 7
      %s197 = scalar_select %p196, %s195, 7
      %s198 = smul.addr %s197, 2
      %s199 = smul.addr %s198, 8
      %s200 = scalar_lea.vmem %s0, %s199
      %p201 = pneg %p37
      %p202 = pneg %p34
      %p203 = pneg %p58
      %p204 = pneg %p55
      %p205 = pneg %p79
      %p206 = pneg %p76
      %p207 = pneg %p100
      %p208 = pneg %p97
      %p209 = pneg %p121
      %p210 = pneg %p118
      %p211 = pneg %p147
      %p212 = pneg %p144
      %s213 = smul.u32 4, %s16
      %p214 = scmp.lt.s32.totalorder %s213, 7
      %s215 = scalar_select %p214, %s213, 7
      %s216 = smul.addr %s215, 4
      %s217 = scalar_lea.vmem %s5, %s216
      %s218 = smul.u32 4, %s16
      %p219 = scmp.lt.s32.totalorder %s218, 7
      %s220 = scalar_select %p219, %s218, 7
      %s221 = smul.addr %s220, 2
      %s222 = smul.addr %s221, 8
      %s223 = scalar_lea.vmem %s0, %s222
      %s224 = smul.u32 4, %s16
      %s225 = smul.u32 4, %s16
      %p226 = scmp.lt.s32.totalorder %s225, 7
      %s227 = scalar_select %p226, %s225, 7
      %s228 = smul.addr %s227, 4
      %s229 = scalar_lea.vmem %s5, %s228
      %s230 = smul.u32 4, %s16
      %v231 = vld [vmem:[%s223] sm:$0xff]
      %v232 = vld [vmem:[%s223 + $0x8] sm:$0xff]
      %v233 = vld [vmem:[%s223 + $0x10] sm:$0xff]
      %v234 = vld [vmem:[%s223 + $0x18] sm:$0xff]
      %v235 = vld [vmem:[%s223 + $0x20] sm:$0xff]
      %v236 = vld [vmem:[%s223 + $0x28] sm:$0xff]
      %v237 = vld [vmem:[%s223 + $0x30] sm:$0xff]
      %v238 = vld [vmem:[%s223 + $0x38] sm:$0xff]
      %v243 = vrot.slane %v231, 4
      %v244 = vrot.slane %v233, 4
      %v245 = vrot.slane %v235, 4
      %v246 = vrot.slane %v237, 4
      %v251 = vadd.f32 %v231, %v243
      %v252 = vadd.f32 %v233, %v244
      %v253 = vadd.f32 %v235, %v245
      %v254 = vadd.f32 %v237, %v246
      %v255 = vadd.f32 %v251, %v232
      %v256 = vadd.f32 %v252, %v234
      %v257 = vadd.f32 %v253, %v236
      %v258 = vadd.f32 %v254, %v238
      %v263 = vrot.slane %v232, 4
      %v264 = vrot.slane %v234, 4
      %v265 = vrot.slane %v236, 4
      %v266 = vrot.slane %v238, 4
      %v271 = vadd.f32 %v255, %v263
      %v272 = vadd.f32 %v256, %v264
      %v273 = vadd.f32 %v257, %v265
      %v274 = vadd.f32 %v258, %v266
      %v275 = vld [vmem:[%s1] sm:$0xff]
      %v276 = vld [vmem:[%s1 + $0x8] sm:$0xff]
      %v277 = vld [vmem:[%s1 + $0x10] sm:$0xff]
      %v278 = vld [vmem:[%s1 + $0x18] sm:$0xff]
      %v279 = vld [vmem:[%s1 + $0x20] sm:$0xff]
      %v280 = vld [vmem:[%s1 + $0x28] sm:$0xff]
      %v281 = vld [vmem:[%s1 + $0x30] sm:$0xff]
      %v282 = vld [vmem:[%s1 + $0x38] sm:$0xff]
      %v283 = vld [vmem:[%s2] sm:$0x1]
      %v285 = vlaneseq
      %v286 = vshrl.u32 %v285, 7
      %v287 = vsub.s32 0, %v286
      %v288 = vrot.slane %v283, %v287
      %v294 = vcombine.low %v271, %v272
      %v295 = vcombine.low %v273, %v274
      %vm296 = vcmask 523264
      %v297 = vsel %vm296, %v294, 0
      %v299 = vsel %vm296, %v295, 0
      %301 = vmatprep.subr.mxu0 0.0
      %302 = vmatpush1.msra.mxu0 %v275
      %303 = vmatprep.subr.mxu0 0.0
      %304 = vmatpush1.msra.mxu0 %v276
      %305 = vmatprep.subr.mxu0 0.0
      %306 = vmatpush1.msra.mxu0 %v277
      %307 = vmatprep.subr.mxu0 0.0
      %308 = vmatpush1.msra.mxu0 %v278
      %309 = vmatprep.subr.mxu0 0.0
      %310 = vmatpush1.msra.mxu0 %v279
      %311 = vmatprep.subr.mxu0 0.0
      %312 = vmatpush1.msra.mxu0 %v280
      %313 = vmatprep.subr.mxu0 0.0
      %314 = vmatpush1.msra.mxu0 %v281
      %315 = vmatprep.subr.mxu0 0.0
      %316 = vmatpush1.msra.mxu0 %v282
      %317 = vmatprep.subr.mxu0 0.0
      %318 = vmatpush1.msra.mxu0 0.0
      %319 = vmatprep.subr.mxu0 0.0
      %320 = vmatpush1.msra.mxu0 0.0
      %321 = vmatprep.subr.mxu0 0.0
      %322 = vmatpush1.msra.mxu0 0.0
      %323 = vmatprep.subr.mxu0 0.0
      %324 = vmatpush1.msra.mxu0 0.0
      %325 = vmatprep.subr.mxu0 0.0
      %326 = vmatpush1.msra.mxu0 0.0
      %327 = vmatprep.subr.mxu0 0.0
      %328 = vmatpush1.msra.mxu0 0.0
      %329 = vmatprep.subr.mxu0 0.0
      %330 = vmatpush1.msra.mxu0 0.0
      %331 = vmatprep.subr.mxu0 0.0
      %332 = vmatpush1.msra.mxu0 0.0
      %333 = vmatprep.subr.mxu0 0.0
      %334 = vmatpush1.msra.mxu0 0.0
      %335 = vmatprep.subr.mxu0 0.0
      %336 = vmatpush1.msra.mxu0 0.0
      %337 = vmatprep.subr.mxu0 0.0
      %338 = vmatpush1.msra.mxu0 0.0
      %339 = vmatprep.subr.mxu0 0.0
      %340 = vmatpush1.msra.mxu0 0.0
      %341 = vmatprep.subr.mxu0 0.0
      %342 = vmatpush1.msra.mxu0 0.0
      %343 = vmatprep.subr.mxu0 0.0
      %344 = vmatpush1.msra.mxu0 0.0
      %345 = vmatprep.subr.mxu0 0.0
      %346 = vmatpush1.msra.mxu0 0.0
      %347 = vmatprep.subr.mxu0 0.0
      %348 = vmatpush1.msra.mxu0 0.0
      %349 = vmatprep.subr.mxu0 0.0
      %350 = vmatpush1.msra.mxu0 0.0
      %351 = vmatprep.subr.mxu0 0.0
      %352 = vmatpush1.msra.mxu0 0.0
      %353 = vmatprep.subr.mxu0 0.0
      %354 = vmatpush1.msra.mxu0 0.0
      %355 = vmatprep.subr.mxu0 0.0
      %356 = vmatpush1.msra.mxu0 0.0
      %357 = vmatprep.subr.mxu0 0.0
      %358 = vmatpush1.msra.mxu0 0.0
      %359 = vmatprep.subr.mxu0 0.0
      %360 = vmatpush1.msra.mxu0 0.0
      %361 = vmatprep.subr.mxu0 0.0
      %362 = vmatpush1.msra.mxu0 0.0
      %363 = vmatprep.subr.mxu0 0.0
      %364 = vmatpush1.msra.mxu0 0.0
      %365 = vmatprep.mubr.f32.mxu0 0.0
      %366 = vmatmul.mubr.f32.gmra.mrb[0].mxu0 %v297
      %v367 = vpop.f32.mrb[0].mxu0
      %v368 = vadd.f32 %v288, %v367
      %v369 = vpop.f32.mrb[0].mxu0
      %370 = vmatprep.mubr.f32.mxu0 0.0
      %371 = vmatmul.mubr.f32.gmra.mrb[0].mxu0 %v299
      %v372 = vpop.f32.mrb[0].mxu0
      %v373 = vadd.f32 %v288, %v372
      %v374 = vpop.f32.mrb[0].mxu0
      %375 = vdwg.mxu0
      %376 = vadd.xlane.f32.xlu0 %v368
      %v377 = vpop.xlane.xlu0 %376
      %378 = vadd.xlane.f32.xlu0 %v373
      %v379 = vpop.xlane.xlu0 %378
      %v380 = vmul.f32 %v377, 0.03125
      %v381 = vmul.f32 %v379, 0.03125
      %v382 = vmul.f32 %v368, %v368
      %v383 = vmul.f32 %v373, %v373
      %384 = vadd.xlane.f32.xlu0 %v382
      %v385 = vpop.xlane.xlu0 %384
      %386 = vadd.xlane.f32.xlu0 %v383
      %v387 = vpop.xlane.xlu0 %386
      %v388 = vmul.f32 %v385, 0.03125
      %v389 = vmul.f32 %v387, 0.03125
      %v390 = vmul.f32 %v380, %v380
      %v391 = vmul.f32 %v381, %v381
      %v392 = vsub.f32 %v388, %v390
      %v393 = vsub.f32 %v389, %v391
      %v394 = vsub.f32 %v368, %v380
      %v395 = vsub.f32 %v373, %v381
      %v396 = vadd.f32 %v392, 1e-06
      %v397 = vadd.f32 %v393, 1e-06
      %v398 = vrsqrt.pop %v396
      %v399 = vrsqrt.pop %v397
      %v400 = vmul.f32 %v394, %v398
      %v401 = vmul.f32 %v395, %v399
      %v402 = vld [vmem:[%s3] sm:$0x1]
      %v404 = vlaneseq
      %v405 = vshrl.u32 %v404, 7
      %v406 = vsub.s32 0, %v405
      %v407 = vrot.slane %v402, %v406
      %v409 = vmul.f32 %v400, %v407
      %v410 = vmul.f32 %v401, %v407
      %v411 = vld [vmem:[%s4] sm:$0x1]
      %v413 = vlaneseq
      %v414 = vshrl.u32 %v413, 7
      %v415 = vsub.s32 0, %v414
      %v416 = vrot.slane %v411, %v415
      %v418 = vadd.f32 %v409, %v416
      %v419 = vadd.f32 %v410, %v416
      %v420 = vmul.f32 %v418, 0.5
      %v421 = vmul.f32 %v419, 0.5
      %v422 = vmul.f32 %v418, 0.70710677
      %v423 = vmul.f32 %v419, 0.70710677
      %v424 = verf.f32.pop %v422
      %v425 = verf.f32.pop %v423
      %v426 = vadd.f32 %v424, 1.0
      %v427 = vadd.f32 %v425, 1.0
      %v428 = vmul.f32 %v420, %v426
      %v429 = vmul.f32 %v421, %v427
      %v432 = vcombine.high %v428, %v428
      %v433 = vcombine.high %v429, %v429
      %436 = vst [vmem:[%s229] sm:$0xf] %v428
      %437 = vst [vmem:[%s229 + $0x4] sm:$0xf] %v432
      %438 = vst [vmem:[%s229 + $0x8] sm:$0xf] %v429
      %439 = vst [vmem:[%s229 + $0xc] sm:$0xf] %v433
      %s440 = smul.u32 4, %s16
      %p441 = scmp.lt.s32.totalorder %s440, 7
      %s442 = scalar_select %p441, %s440, 7
      %s443 = smul.addr %s442, 4
      %s444 = scalar_lea.vmem %s5, %s443
      // Predicated region
      $region41: #{fcu_down.1} parent=39 // pred_check
        %p445 = pneg %p144
      $region42: #{fcu_down.1} parent=39 // pred_check_branch
        %447 = sbr.rel (%p445) target = $region44
      $region43: #{fcu_down.1} parent=39 // pred_region
        %s448 = smul.u32 4, %s16
      $region44: #{fcu_down.1} parent=39 // pred_fallthru
        _
    $region40: #{fcu_down.1} parent=5 // pred_fallthru
      _
    %p449 = scmp.le.s32.totalorder 2, %s11
    // Predicated region
    $region45: #{fcu_down.1} parent=5 // pred_check
      %p450 = pneg %p449
    $region46: #{fcu_down.1} parent=5 // pred_check_branch
      %452 = sbr.rel (%p450) target = $region48
    $region47: #{fcu_down.1} parent=5 // pred_region
      %s453 = ssub.s32 %s11, 2
      // Predicated region
      $region49: #{fcu_down.1} parent=47 // pred_check
        %p454 = pneg %p150
      $region50: #{fcu_down.1} parent=47 // pred_check_branch
        %456 = sbr.rel (%p454) target = $region52
      $region51: #{fcu_down.1} parent=47 // pred_region
        %s457 = smul.u32 4, %s17
        %p458 = scmp.lt.s32.totalorder %s457, 7
        %s459 = scalar_select %p458, %s457, 7
        %s460 = smul.addr %s459, 4
        %s461 = scalar_lea.vmem %s5, %s460
      $region52: #{fcu_down.1} parent=47 // pred_fallthru
        _
    $region48: #{fcu_down.1} parent=5 // pred_fallthru
      _
  $region6: #{fcu_down.1} parent=0 // loop_footer
    %s15 = sadd.s32 1, %s11
  $region7: #{fcu_down.1} parent=0 // loop_footer_branch
    %10 = sbr.rel target = $region3
  $region8: #{fcu_down.1} parent=0 // loop_exit
    _

</llo_original>
